<compile_context>
chip_gen: v5e
topology: v5e:2x2
jax: 0.10.0
libtpu: 0.0.40
codegen_flags: <defaults>
</compile_context>

<pallas_src>
import functools

import jax
import jax.numpy as jnp
from jax.experimental import pallas as pl
from jax.experimental.pallas import tpu as pltpu

LN_EPS = 1e-5  # torch.nn.LayerNorm default


# ----------------------------- kernel helpers -----------------------------
def _layernorm(x, w, b):
    # x: (M, C) f32; w, b: (1, C) f32
    mu = jnp.mean(x, axis=-1, keepdims=True)
    var = jnp.mean(jnp.square(x - mu), axis=-1, keepdims=True)
    return (x - mu) * jax.lax.rsqrt(var + LN_EPS) * w + b


def _mha(q, k, v, bt, t_len, s_len, num_heads, head_dim):
    # q: (Bt*T, C) bf16 (attention scale already folded into the q projection);
    # k, v: (Bt*S, C) bf16.  Heads are split via lane slices + major-dim concat
    # (guaranteed Mosaic lowering), then all (head, batch) pairs are processed by a
    # single batched bf16 einsum on the MXU with f32 accumulation; f32 softmax with
    # max-subtraction (matches the PyTorch Attention module); normalization via the
    # EUP approximate reciprocal.
    # TODO(synk): switch the head split/merge to a single reshape / pltpu.einshape
    # once general lane->sublane relayout support is guaranteed on deployed Mosaic.
    def split(x2d, seq):
        heads = [x2d[:, h * head_dim:(h + 1) * head_dim].reshape(bt, seq, head_dim)
                 for h in range(num_heads)]
        return heads[0] if num_heads == 1 else jnp.concatenate(heads, axis=0)

    qh = split(q, t_len)   # (H*Bt, T, hd)
    kh = split(k, s_len)   # (H*Bt, S, hd)
    vh = split(v, s_len)   # (H*Bt, S, hd)

    s = jnp.einsum("btd,bsd->bts", qh, kh, preferred_element_type=jnp.float32)
    s = s - jnp.max(s, axis=-1, keepdims=True)
    p = jnp.exp(s)
    p = p * pl.reciprocal(jnp.sum(p, axis=-1, keepdims=True), approx=True)
    o = jnp.einsum("bts,bsd->btd", p.astype(jnp.bfloat16), vh,
                   preferred_element_type=jnp.float32)               # (H*Bt, T, hd) f32

    # merge heads: (H*Bt, T, hd) -> (Bt, T, C) -> (Bt*T, C)
    merged = jnp.concatenate([o[h * bt:(h + 1) * bt] for h in range(num_heads)],
                             axis=-1)
    return merged.reshape(bt * t_len, num_heads * head_dim)


# --------------------------------- kernel ---------------------------------
def _block_kernel(*refs, num_heads, cross_attn, gelu_approx):
    it = iter(refs)
    x_ref = next(it)
    slots_ref = next(it) if cross_attn else None
    ln1_w, ln1_b = next(it), next(it)
    wqkv_s = next(it)
    wproj, bproj = next(it), next(it)
    if cross_attn:
        lnc_w, lnc_b = next(it), next(it)
        wq_c, wkv_c, wo_c = next(it), next(it), next(it)
    ln2_w, ln2_b = next(it), next(it)
    fc1_w, fc1_b = next(it), next(it)
    fc2_w, fc2_b = next(it), next(it)
    o_ref = next(it)

    bt, n, c = x_ref.shape
    hd = c // num_heads

    x = x_ref[...].astype(jnp.float32).reshape(bt * n, c)   # (Bt*N, C), f32

    # ---- x = x + proj(self_attn(norm1(x)))  (drop_path / dropouts are identity) ----
    h = _layernorm(x, ln1_w[...], ln1_b[...]).astype(jnp.bfloat16)
    qkv = jnp.dot(h, wqkv_s[...], preferred_element_type=jnp.float32)  # (M, 3C)
    q = qkv[:, :c].astype(jnp.bfloat16)
    k = qkv[:, c:2 * c].astype(jnp.bfloat16)
    v = qkv[:, 2 * c:].astype(jnp.bfloat16)
    y = _mha(q, k, v, bt, n, n, num_heads, hd)
    y = jnp.dot(y.astype(jnp.bfloat16), wproj[...],
                preferred_element_type=jnp.float32) + bproj[...]
    x = x + y

    # ---- optional MAGE cross-attention (dec=True, cross_attn=True) ----
    if cross_attn:
        s_len = slots_ref.shape[1]
        slots = slots_ref[...].astype(jnp.bfloat16).reshape(bt * s_len, c)
        xc = _layernorm(x, lnc_w[...], lnc_b[...]).astype(jnp.bfloat16)
        qc = jnp.dot(xc, wq_c[...], preferred_element_type=jnp.float32
                     ).astype(jnp.bfloat16)
        kvc = jnp.dot(slots, wkv_c[...], preferred_element_type=jnp.float32)  # (Ms, 2C)
        kc = kvc[:, :c].astype(jnp.bfloat16)
        vc = kvc[:, c:].astype(jnp.bfloat16)
        yc = _mha(qc, kc, vc, bt, n, s_len, num_heads, hd)
        x = x + jnp.dot(yc.astype(jnp.bfloat16), wo_c[...],
                        preferred_element_type=jnp.float32)          # proj_o, no bias

    # ---- x = x + mlp(norm2(x)) ----
    h2 = _layernorm(x, ln2_w[...], ln2_b[...]).astype(jnp.bfloat16)
    m = jnp.dot(h2, fc1_w[...], preferred_element_type=jnp.float32) + fc1_b[...]
    m = jax.nn.gelu(m, approximate=gelu_approx)   # tanh-approx by default (EUP-friendly)
    m = jnp.dot(m.astype(jnp.bfloat16), fc2_w[...],
                preferred_element_type=jnp.float32) + fc2_b[...]
    x = x + m

    o_ref[...] = x.reshape(bt, n, c).astype(o_ref.dtype)


# -------------------------------- wrapper ----------------------------------
def _prep_kernel_params(params, num_heads, cross):
    """Fuse / scale-fold / bf16-cast the matmul weights; keep LN + bias params f32."""
    c = params["wqkv"].shape[0]
    scale = (c // num_heads) ** -0.5
    bf = lambda a: a.astype(jnp.bfloat16)
    wqkv = params["wqkv"]
    # fold 1/sqrt(hd) into the q columns of the fused qkv weight
    wqkv_scaled = jnp.concatenate([wqkv[:, :c] * scale, wqkv[:, c:]], axis=1)
    kp = {
        "ln1_w": params["ln1_w"], "ln1_b": params["ln1_b"],
        "wqkv_s": bf(wqkv_scaled),
        "wproj": bf(params["wproj"]), "bproj": params["bproj"],
        "ln2_w": params["ln2_w"], "ln2_b": params["ln2_b"],
        "fc1_w": bf(params["fc1_w"]), "fc1_b": params["fc1_b"],
        "fc2_w": bf(params["fc2_w"]), "fc2_b": params["fc2_b"],
    }
    if cross:
        kp.update({
            "lnc_w": params["lnc_w"], "lnc_b": params["lnc_b"],
            "wq_c": bf(params["wq"] * scale),
            "wkv_c": bf(jnp.concatenate([params["wk"], params["wv"]], axis=1)),
            "wo_c": bf(params["wo"]),
        })
    return kp


def _choose_block_b(batch, n, c, s, num_heads):
    """Largest divisor of `batch` whose per-step f32 working set fits a small budget,
    preferring >= 2 grid steps so both v7x TensorCores get work."""
    per_b = 4 * (8 * n * c + 2 * s * c + num_heads * n * max(n, s, 1))
    budget = 4 << 20
    divisors = [d for d in range(1, batch + 1) if batch % d == 0]
    fitting = [d for d in divisors if d * per_b <= budget] or [1]
    multi = [d for d in fitting if batch // d >= 2]
    return max(multi) if multi else max(fitting)


def block_forward(x, params, *, num_heads, slots=None, gelu_approx=True, block_b=None):
    """x: (B, N, C) float32; slots: optional (B, S, C) for the cross-attn decoder.

    gelu_approx=True uses the tanh approximation (EUP); pass False for torch's exact
    erf GELU if bitwise parity matters more than speed.
    """
    B, N, C = x.shape
    cross = slots is not None
    S = slots.shape[1] if cross else 0

    kp = _prep_kernel_params(params, num_heads, cross)
    names = ["ln1_w", "ln1_b", "wqkv_s", "wproj", "bproj"]
    if cross:
        names += ["lnc_w", "lnc_b", "wq_c", "wkv_c", "wo_c"]
    names += ["ln2_w", "ln2_b", "fc1_w", "fc1_b", "fc2_w", "fc2_b"]
    weights = [kp[n] for n in names]

    Bt = block_b if block_b is not None else _choose_block_b(B, N, C, S, num_heads)
    assert B % Bt == 0, "block_b must divide the batch size"
    grid = (B // Bt,)

    inputs = [x]
    in_specs = [pl.BlockSpec((Bt, N, C), lambda g: (g, 0, 0))]
    if cross:
        inputs.append(slots)
        in_specs.append(pl.BlockSpec((Bt, S, C), lambda g: (g, 0, 0)))
    for w in weights:
        inputs.append(w)
        # Whole-array block + constant index_map: fetched once, no per-step re-DMA.
        # TODO(synk): single-buffer invariant weights (whole-array VMEM spec /
        # pl.Buffered(1)) to halve their VMEM footprint at large C.
        in_specs.append(pl.BlockSpec(w.shape, lambda g: (0, 0)))

    # VMEM budget: bf16 weights (x2 for pipeline buffering) + activation tiles + scratch.
    hid = params["fc1_w"].shape[1]
    weight_bytes = sum(w.size * w.dtype.itemsize for w in weights)
    act_bytes = 4 * Bt * N * C * 4 + (4 * Bt * S * C * 2 if cross else 0)
    scratch_bytes = 4 * Bt * N * (hid + 8 * C) + 4 * Bt * num_heads * N * max(N, S, 1)
    vmem_limit = int(min(max(2 * weight_bytes + act_bytes + scratch_bytes + (4 << 20),
                             32 << 20), 100 << 20))
    # TODO(synk): on v7x (64 MiB/TC) very large C needs hidden-dim (K) blocking of the
    # MLP instead of just raising vmem_limit_bytes.

    kernel = functools.partial(
        _block_kernel, num_heads=num_heads, cross_attn=cross, gelu_approx=gelu_approx)
    return pl.pallas_call(
        kernel,
        out_shape=jax.ShapeDtypeStruct((B, N, C), x.dtype),
        grid=grid,
        in_specs=in_specs,
        out_specs=pl.BlockSpec((Bt, N, C), lambda g: (g, 0, 0)),
        compiler_params=pltpu.CompilerParams(
            dimension_semantics=("parallel",),
            vmem_limit_bytes=vmem_limit),
    )(*inputs)


# ------------------------ deterministic parameter init ----------------------
def init_params(key, dim, mlp_ratio=4.0, cross_attn=False):
    hid = int(dim * mlp_ratio)
    ks = jax.random.split(key, 12)

    def lin(k, fan_in, fan_out):  # stored as (in, out) = torch_weight.T
        return jax.random.normal(k, (fan_in, fan_out), jnp.float32) * (fan_in ** -0.5)

    p = {
        "ln1_w": jnp.ones((1, dim), jnp.float32),
        "ln1_b": jnp.zeros((1, dim), jnp.float32),
        "wqkv": lin(ks[0], dim, 3 * dim),                 # qkv_bias=False
        "wproj": lin(ks[1], dim, dim),
        "bproj": jax.random.normal(ks[2], (1, dim), jnp.float32) * 0.02,
        "ln2_w": jnp.ones((1, dim), jnp.float32),
        "ln2_b": jnp.zeros((1, dim), jnp.float32),
        "fc1_w": lin(ks[3], dim, hid),
        "fc1_b": jax.random.normal(ks[4], (1, hid), jnp.float32) * 0.02,
        "fc2_w": lin(ks[5], hid, dim),
        "fc2_b": jax.random.normal(ks[6], (1, dim), jnp.float32) * 0.02,
    }
    if cross_attn:
        p.update({
            "lnc_w": jnp.ones((1, dim), jnp.float32),
            "lnc_b": jnp.zeros((1, dim), jnp.float32),
            "wq": lin(ks[7], dim, dim),
            "wk": lin(ks[8], dim, dim),
            "wv": lin(ks[9], dim, dim),
            "wo": lin(ks[10], dim, dim),
        })
    return p


# ---------------------------- pure-JAX reference ----------------------------
def block_reference(x, params, *, num_heads, slots=None, gelu_approx=True):
    def ln(t, w, b):
        mu = t.mean(-1, keepdims=True)
        var = ((t - mu) ** 2).mean(-1, keepdims=True)
        return (t - mu) / jnp.sqrt(var + LN_EPS) * w[0] + b[0]

    B, N, C = x.shape
    hd = C // num_heads

    def mha(q, k, v):
        T, S = q.shape[1], k.shape[1]
        q = q.reshape(B, T, num_heads, hd).transpose(0, 2, 1, 3)
        k = k.reshape(B, S, num_heads, hd).transpose(0, 2, 1, 3)
        v = v.reshape(B, S, num_heads, hd).transpose(0, 2, 1, 3)
        a = jnp.einsum("bhtd,bhsd->bhts", q, k) * hd ** -0.5
        a = jax.nn.softmax(a, axis=-1)
        return jnp.einsum("bhts,bhsd->bhtd", a, v).transpose(0, 2, 1, 3).reshape(B, T, C)

    h = ln(x, params["ln1_w"], params["ln1_b"])
    qkv = h @ params["wqkv"]
    y = mha(qkv[..., :C], qkv[..., C:2 * C], qkv[..., 2 * C:])
    x = x + (y @ params["wproj"] + params["bproj"][0])
    if slots is not None:
        xc = ln(x, params["lnc_w"], params["lnc_b"])
        yc = mha(xc @ params["wq"], slots @ params["wk"], slots @ params["wv"])
        x = x + yc @ params["wo"]
    h2 = ln(x, params["ln2_w"], params["ln2_b"])
    m = jax.nn.gelu(h2 @ params["fc1_w"] + params["fc1_b"][0], approximate=gelu_approx)
    return x + (m @ params["fc2_w"] + params["fc2_b"][0])


# ----------------------------------- main -----------------------------------
if __name__ == "__main__":
    # TODO(synk): the `return_attention=True` path (returning attn probs only) is not implemented.
    key = jax.random.PRNGKey(0)
    B, N, C, H = 2, 8, 32, 4     # batch, seq, dim, num_heads  (head_dim=8, mlp_hidden=128)
    S = 8                        # number of slots for the decoder cross-attn variant
    kx, ks, kp1, kp2 = jax.random.split(key, 4)
    x = jax.random.normal(kx, (B, N, C), jnp.float32)
    slots = jax.random.normal(ks, (B, S, C), jnp.float32)

    def run(params, slots_arg):
        out = jax.block_until_ready(
            block_forward(x, params, num_heads=H, slots=slots_arg, gelu_approx=True))
        ref = block_reference(x, params, num_heads=H, slots=slots_arg, gelu_approx=True)
        # bf16 matmul operands (f32 accumulation) vs the f32 reference -> widened tolerance.
        err = float(jnp.max(jnp.abs(out - ref)))
        assert jnp.allclose(out, ref, rtol=5e-2, atol=5e-2), f"max abs err {err}"
        return out

    run(init_params(kp1, C, cross_attn=False), None)     # standard encoder block
    run(init_params(kp2, C, cross_attn=True), slots)     # MAGE decoder block w/ cross-attn
    print("KERNEL_OK")
</pallas_src>

<mosaic_0001>
module attributes {stable_mosaic.version = 11 : i64} {
  func.func @_block_kernel(%arg0: i32, %arg1: memref<1x8x32xf32, #tpu.memory_space<vmem>>, %arg2: memref<1x32xf32, #tpu.memory_space<vmem>>, %arg3: memref<1x32xf32, #tpu.memory_space<vmem>>, %arg4: memref<32x96xbf16, #tpu.memory_space<vmem>>, %arg5: memref<32x32xbf16, #tpu.memory_space<vmem>>, %arg6: memref<1x32xf32, #tpu.memory_space<vmem>>, %arg7: memref<1x32xf32, #tpu.memory_space<vmem>>, %arg8: memref<1x32xf32, #tpu.memory_space<vmem>>, %arg9: memref<32x128xbf16, #tpu.memory_space<vmem>>, %arg10: memref<1x128xf32, #tpu.memory_space<vmem>>, %arg11: memref<128x32xbf16, #tpu.memory_space<vmem>>, %arg12: memref<1x32xf32, #tpu.memory_space<vmem>>, %arg13: memref<1x8x32xf32, #tpu.memory_space<vmem>>) attributes {dimension_semantics = [#tpu.dimension_semantics<parallel>], iteration_bounds = array<i64: 2>, scalar_prefetch = 0 : i64, scratch_operands = 0 : i64, tpu.core_type = #tpu.core_type<tc>, window_params = [{transform_indices = @transform_0, window_bounds = array<i64: 1, 8, 32>}, {pipeline_mode = #tpu.pipeline_mode<synchronous>, transform_indices = @transform_1, window_bounds = array<i64: 1, 32>}, {pipeline_mode = #tpu.pipeline_mode<synchronous>, transform_indices = @transform_2, window_bounds = array<i64: 1, 32>}, {pipeline_mode = #tpu.pipeline_mode<synchronous>, transform_indices = @transform_3, window_bounds = array<i64: 32, 96>}, {pipeline_mode = #tpu.pipeline_mode<synchronous>, transform_indices = @transform_4, window_bounds = array<i64: 32, 32>}, {pipeline_mode = #tpu.pipeline_mode<synchronous>, transform_indices = @transform_5, window_bounds = array<i64: 1, 32>}, {pipeline_mode = #tpu.pipeline_mode<synchronous>, transform_indices = @transform_6, window_bounds = array<i64: 1, 32>}, {pipeline_mode = #tpu.pipeline_mode<synchronous>, transform_indices = @transform_7, window_bounds = array<i64: 1, 32>}, {pipeline_mode = #tpu.pipeline_mode<synchronous>, transform_indices = @transform_8, window_bounds = array<i64: 32, 128>}, {pipeline_mode = #tpu.pipeline_mode<synchronous>, transform_indices = @transform_9, window_bounds = array<i64: 1, 128>}, {pipeline_mode = #tpu.pipeline_mode<synchronous>, transform_indices = @transform_10, window_bounds = array<i64: 128, 32>}, {pipeline_mode = #tpu.pipeline_mode<synchronous>, transform_indices = @transform_11, window_bounds = array<i64: 1, 32>}, {transform_indices = @transform_12, window_bounds = array<i64: 1, 8, 32>}]} {
    %c0 = arith.constant 0 : index
    %c0_0 = arith.constant 0 : index
    %c0_1 = arith.constant 0 : index
    %0 = vector.load %arg1[%c0, %c0_0, %c0_1] : memref<1x8x32xf32, #tpu.memory_space<vmem>>, vector<1x8x32xf32>
    %1 = vector.shape_cast %0 : vector<1x8x32xf32> to vector<8x32xf32>
    %c0_2 = arith.constant 0 : index
    %c0_3 = arith.constant 0 : index
    %2 = vector.load %arg2[%c0_2, %c0_3] : memref<1x32xf32, #tpu.memory_space<vmem>>, vector<1x32xf32>
    %c0_4 = arith.constant 0 : index
    %c0_5 = arith.constant 0 : index
    %3 = vector.load %arg3[%c0_4, %c0_5] : memref<1x32xf32, #tpu.memory_space<vmem>>, vector<1x32xf32>
    %cst = arith.constant dense<0.000000e+00> : vector<8xf32>
    %4 = vector.multi_reduction <add>, %1, %cst [1] : vector<8x32xf32> to vector<8xf32>
    %5 = vector.shape_cast %4 : vector<8xf32> to vector<8x1xf32>
    %cst_6 = arith.constant 3.200000e+01 : f32
    %6 = vector.broadcast %cst_6 : f32 to vector<8x1xf32>
    %7 = arith.divf %5, %6 : vector<8x1xf32>
    %8 = vector.broadcast %7 : vector<8x1xf32> to vector<8x32xf32>
    %9 = arith.subf %1, %8 : vector<8x32xf32>
    %10 = arith.mulf %9, %9 : vector<8x32xf32>
    %cst_7 = arith.constant dense<0.000000e+00> : vector<8xf32>
    %11 = vector.multi_reduction <add>, %10, %cst_7 [1] : vector<8x32xf32> to vector<8xf32>
    %12 = vector.shape_cast %11 : vector<8xf32> to vector<8x1xf32>
    %cst_8 = arith.constant 3.200000e+01 : f32
    %13 = vector.broadcast %cst_8 : f32 to vector<8x1xf32>
    %14 = arith.divf %12, %13 : vector<8x1xf32>
    %15 = vector.broadcast %7 : vector<8x1xf32> to vector<8x32xf32>
    %16 = arith.subf %1, %15 : vector<8x32xf32>
    %cst_9 = arith.constant 9.99999974E-6 : f32
    %17 = vector.broadcast %cst_9 : f32 to vector<8x1xf32>
    %18 = arith.addf %14, %17 : vector<8x1xf32>
    %19 = math.rsqrt %18 : vector<8x1xf32>
    %20 = vector.broadcast %19 : vector<8x1xf32> to vector<8x32xf32>
    %21 = arith.mulf %16, %20 : vector<8x32xf32>
    %22 = vector.broadcast %2 : vector<1x32xf32> to vector<8x32xf32>
    %23 = arith.mulf %21, %22 : vector<8x32xf32>
    %24 = vector.broadcast %3 : vector<1x32xf32> to vector<8x32xf32>
    %25 = arith.addf %23, %24 : vector<8x32xf32>
    %26 = arith.truncf %25 : vector<8x32xf32> to vector<8x32xbf16>
    %c0_10 = arith.constant 0 : index
    %c0_11 = arith.constant 0 : index
    %27 = vector.load %arg4[%c0_10, %c0_11] : memref<32x96xbf16, #tpu.memory_space<vmem>>, vector<32x96xbf16>
    %cst_12 = arith.constant dense<0.000000e+00> : vector<8x96xf32>
    %28 = tpu.matmul %26, %27, %cst_12 {dimension_numbers = #tpu.dot_dimension_numbers<[1], [0], [0], [1], [0, 0, 1, 1], [], []>} : vector<8x32xbf16>, vector<32x96xbf16>, vector<8x96xf32> -> vector<8x96xf32>
    %29 = vector.extract_strided_slice %28 {offsets = [0, 0], sizes = [8, 32], strides = [1, 1]} : vector<8x96xf32> to vector<8x32xf32>
    %30 = arith.truncf %29 : vector<8x32xf32> to vector<8x32xbf16>
    %31 = vector.extract_strided_slice %28 {offsets = [0, 32], sizes = [8, 32], strides = [1, 1]} : vector<8x96xf32> to vector<8x32xf32>
    %32 = arith.truncf %31 : vector<8x32xf32> to vector<8x32xbf16>
    %33 = vector.extract_strided_slice %28 {offsets = [0, 64], sizes = [8, 32], strides = [1, 1]} : vector<8x96xf32> to vector<8x32xf32>
    %34 = arith.truncf %33 : vector<8x32xf32> to vector<8x32xbf16>
    %35 = vector.extract_strided_slice %30 {offsets = [0, 0], sizes = [8, 8], strides = [1, 1]} : vector<8x32xbf16> to vector<8x8xbf16>
    %36 = vector.shape_cast %35 : vector<8x8xbf16> to vector<1x8x8xbf16>
    %37 = vector.extract_strided_slice %30 {offsets = [0, 8], sizes = [8, 8], strides = [1, 1]} : vector<8x32xbf16> to vector<8x8xbf16>
    %38 = vector.shape_cast %37 : vector<8x8xbf16> to vector<1x8x8xbf16>
    %39 = vector.extract_strided_slice %30 {offsets = [0, 16], sizes = [8, 8], strides = [1, 1]} : vector<8x32xbf16> to vector<8x8xbf16>
    %40 = vector.shape_cast %39 : vector<8x8xbf16> to vector<1x8x8xbf16>
    %41 = vector.extract_strided_slice %30 {offsets = [0, 24], sizes = [8, 8], strides = [1, 1]} : vector<8x32xbf16> to vector<8x8xbf16>
    %42 = vector.shape_cast %41 : vector<8x8xbf16> to vector<1x8x8xbf16>
    %43 = tpu.concatenate %36, %38, %40, %42 in 0 : vector<1x8x8xbf16>, vector<1x8x8xbf16>, vector<1x8x8xbf16>, vector<1x8x8xbf16> -> vector<4x8x8xbf16>
    %44 = vector.extract_strided_slice %32 {offsets = [0, 0], sizes = [8, 8], strides = [1, 1]} : vector<8x32xbf16> to vector<8x8xbf16>
    %45 = vector.shape_cast %44 : vector<8x8xbf16> to vector<1x8x8xbf16>
    %46 = vector.extract_strided_slice %32 {offsets = [0, 8], sizes = [8, 8], strides = [1, 1]} : vector<8x32xbf16> to vector<8x8xbf16>
    %47 = vector.shape_cast %46 : vector<8x8xbf16> to vector<1x8x8xbf16>
    %48 = vector.extract_strided_slice %32 {offsets = [0, 16], sizes = [8, 8], strides = [1, 1]} : vector<8x32xbf16> to vector<8x8xbf16>
    %49 = vector.shape_cast %48 : vector<8x8xbf16> to vector<1x8x8xbf16>
    %50 = vector.extract_strided_slice %32 {offsets = [0, 24], sizes = [8, 8], strides = [1, 1]} : vector<8x32xbf16> to vector<8x8xbf16>
    %51 = vector.shape_cast %50 : vector<8x8xbf16> to vector<1x8x8xbf16>
    %52 = tpu.concatenate %45, %47, %49, %51 in 0 : vector<1x8x8xbf16>, vector<1x8x8xbf16>, vector<1x8x8xbf16>, vector<1x8x8xbf16> -> vector<4x8x8xbf16>
    %53 = vector.extract_strided_slice %34 {offsets = [0, 0], sizes = [8, 8], strides = [1, 1]} : vector<8x32xbf16> to vector<8x8xbf16>
    %54 = vector.shape_cast %53 : vector<8x8xbf16> to vector<1x8x8xbf16>
    %55 = vector.extract_strided_slice %34 {offsets = [0, 8], sizes = [8, 8], strides = [1, 1]} : vector<8x32xbf16> to vector<8x8xbf16>
    %56 = vector.shape_cast %55 : vector<8x8xbf16> to vector<1x8x8xbf16>
    %57 = vector.extract_strided_slice %34 {offsets = [0, 16], sizes = [8, 8], strides = [1, 1]} : vector<8x32xbf16> to vector<8x8xbf16>
    %58 = vector.shape_cast %57 : vector<8x8xbf16> to vector<1x8x8xbf16>
    %59 = vector.extract_strided_slice %34 {offsets = [0, 24], sizes = [8, 8], strides = [1, 1]} : vector<8x32xbf16> to vector<8x8xbf16>
    %60 = vector.shape_cast %59 : vector<8x8xbf16> to vector<1x8x8xbf16>
    %61 = tpu.concatenate %54, %56, %58, %60 in 0 : vector<1x8x8xbf16>, vector<1x8x8xbf16>, vector<1x8x8xbf16>, vector<1x8x8xbf16> -> vector<4x8x8xbf16>
    "tpu.trace_start"() <{level = 10 : i32, message = "btd,bsd->bts"}> : () -> ()
    %cst_13 = arith.constant dense<0.000000e+00> : vector<4x8x8xf32>
    %62 = tpu.matmul %43, %52, %cst_13 {dimension_numbers = #tpu.dot_dimension_numbers<[2], [2], [1], [1], [0, 0, 0, 1, 1, 1], [0], [0]>} : vector<4x8x8xbf16>, vector<4x8x8xbf16>, vector<4x8x8xf32> -> vector<4x8x8xf32>
    "tpu.trace_stop"() : () -> ()
    %cst_14 = arith.constant dense<0xFF800000> : vector<4x8xf32>
    %63 = vector.multi_reduction <maximumf>, %62, %cst_14 [2] : vector<4x8x8xf32> to vector<4x8xf32>
    %64 = vector.shape_cast %63 : vector<4x8xf32> to vector<4x8x1xf32>
    %65 = vector.broadcast %64 : vector<4x8x1xf32> to vector<4x8x8xf32>
    %66 = arith.subf %62, %65 : vector<4x8x8xf32>
    %67 = math.exp %66 : vector<4x8x8xf32>
    %cst_15 = arith.constant dense<0.000000e+00> : vector<4x8xf32>
    %68 = vector.multi_reduction <add>, %67, %cst_15 [2] : vector<4x8x8xf32> to vector<4x8xf32>
    %69 = vector.shape_cast %68 : vector<4x8xf32> to vector<4x8x1xf32>
    %70 = tpu.reciprocal %69 {approx = true} : vector<4x8x1xf32> -> vector<4x8x1xf32>
    %71 = vector.broadcast %70 : vector<4x8x1xf32> to vector<4x8x8xf32>
    %72 = arith.mulf %67, %71 : vector<4x8x8xf32>
    %73 = arith.truncf %72 : vector<4x8x8xf32> to vector<4x8x8xbf16>
    "tpu.trace_start"() <{level = 10 : i32, message = "bts,bsd->btd"}> : () -> ()
    %cst_16 = arith.constant dense<0.000000e+00> : vector<4x8x8xf32>
    %74 = tpu.matmul %73, %61, %cst_16 {dimension_numbers = #tpu.dot_dimension_numbers<[2], [1], [1], [2], [0, 0, 0, 1, 1, 2], [0], [0]>} : vector<4x8x8xbf16>, vector<4x8x8xbf16>, vector<4x8x8xf32> -> vector<4x8x8xf32>
    "tpu.trace_stop"() : () -> ()
    %75 = vector.extract_strided_slice %74 {offsets = [0, 0, 0], sizes = [1, 8, 8], strides = [1, 1, 1]} : vector<4x8x8xf32> to vector<1x8x8xf32>
    %76 = vector.extract_strided_slice %74 {offsets = [1, 0, 0], sizes = [1, 8, 8], strides = [1, 1, 1]} : vector<4x8x8xf32> to vector<1x8x8xf32>
    %77 = vector.extract_strided_slice %74 {offsets = [2, 0, 0], sizes = [1, 8, 8], strides = [1, 1, 1]} : vector<4x8x8xf32> to vector<1x8x8xf32>
    %78 = vector.extract_strided_slice %74 {offsets = [3, 0, 0], sizes = [1, 8, 8], strides = [1, 1, 1]} : vector<4x8x8xf32> to vector<1x8x8xf32>
    %79 = tpu.concatenate %75, %76, %77, %78 in 2 : vector<1x8x8xf32>, vector<1x8x8xf32>, vector<1x8x8xf32>, vector<1x8x8xf32> -> vector<1x8x32xf32>
    %80 = vector.shape_cast %79 : vector<1x8x32xf32> to vector<8x32xf32>
    %81 = arith.truncf %80 : vector<8x32xf32> to vector<8x32xbf16>
    %c0_17 = arith.constant 0 : index
    %c0_18 = arith.constant 0 : index
    %82 = vector.load %arg5[%c0_17, %c0_18] : memref<32x32xbf16, #tpu.memory_space<vmem>>, vector<32x32xbf16>
    %cst_19 = arith.constant dense<0.000000e+00> : vector<8x32xf32>
    %83 = tpu.matmul %81, %82, %cst_19 {dimension_numbers = #tpu.dot_dimension_numbers<[1], [0], [0], [1], [0, 0, 1, 1], [], []>} : vector<8x32xbf16>, vector<32x32xbf16>, vector<8x32xf32> -> vector<8x32xf32>
    %c0_20 = arith.constant 0 : index
    %c0_21 = arith.constant 0 : index
    %84 = vector.load %arg6[%c0_20, %c0_21] : memref<1x32xf32, #tpu.memory_space<vmem>>, vector<1x32xf32>
    %85 = vector.broadcast %84 : vector<1x32xf32> to vector<8x32xf32>
    %86 = arith.addf %83, %85 : vector<8x32xf32>
    %87 = arith.addf %1, %86 : vector<8x32xf32>
    %c0_22 = arith.constant 0 : index
    %c0_23 = arith.constant 0 : index
    %88 = vector.load %arg7[%c0_22, %c0_23] : memref<1x32xf32, #tpu.memory_space<vmem>>, vector<1x32xf32>
    %c0_24 = arith.constant 0 : index
    %c0_25 = arith.constant 0 : index
    %89 = vector.load %arg8[%c0_24, %c0_25] : memref<1x32xf32, #tpu.memory_space<vmem>>, vector<1x32xf32>
    %cst_26 = arith.constant dense<0.000000e+00> : vector<8xf32>
    %90 = vector.multi_reduction <add>, %87, %cst_26 [1] : vector<8x32xf32> to vector<8xf32>
    %91 = vector.shape_cast %90 : vector<8xf32> to vector<8x1xf32>
    %cst_27 = arith.constant 3.200000e+01 : f32
    %92 = vector.broadcast %cst_27 : f32 to vector<8x1xf32>
    %93 = arith.divf %91, %92 : vector<8x1xf32>
    %94 = vector.broadcast %93 : vector<8x1xf32> to vector<8x32xf32>
    %95 = arith.subf %87, %94 : vector<8x32xf32>
    %96 = arith.mulf %95, %95 : vector<8x32xf32>
    %cst_28 = arith.constant dense<0.000000e+00> : vector<8xf32>
    %97 = vector.multi_reduction <add>, %96, %cst_28 [1] : vector<8x32xf32> to vector<8xf32>
    %98 = vector.shape_cast %97 : vector<8xf32> to vector<8x1xf32>
    %cst_29 = arith.constant 3.200000e+01 : f32
    %99 = vector.broadcast %cst_29 : f32 to vector<8x1xf32>
    %100 = arith.divf %98, %99 : vector<8x1xf32>
    %101 = vector.broadcast %93 : vector<8x1xf32> to vector<8x32xf32>
    %102 = arith.subf %87, %101 : vector<8x32xf32>
    %cst_30 = arith.constant 9.99999974E-6 : f32
    %103 = vector.broadcast %cst_30 : f32 to vector<8x1xf32>
    %104 = arith.addf %100, %103 : vector<8x1xf32>
    %105 = math.rsqrt %104 : vector<8x1xf32>
    %106 = vector.broadcast %105 : vector<8x1xf32> to vector<8x32xf32>
    %107 = arith.mulf %102, %106 : vector<8x32xf32>
    %108 = vector.broadcast %88 : vector<1x32xf32> to vector<8x32xf32>
    %109 = arith.mulf %107, %108 : vector<8x32xf32>
    %110 = vector.broadcast %89 : vector<1x32xf32> to vector<8x32xf32>
    %111 = arith.addf %109, %110 : vector<8x32xf32>
    %112 = arith.truncf %111 : vector<8x32xf32> to vector<8x32xbf16>
    %c0_31 = arith.constant 0 : index
    %c0_32 = arith.constant 0 : index
    %113 = vector.load %arg9[%c0_31, %c0_32] : memref<32x128xbf16, #tpu.memory_space<vmem>>, vector<32x128xbf16>
    %cst_33 = arith.constant dense<0.000000e+00> : vector<8x128xf32>
    %114 = tpu.matmul %112, %113, %cst_33 {dimension_numbers = #tpu.dot_dimension_numbers<[1], [0], [0], [1], [0, 0, 1, 1], [], []>} : vector<8x32xbf16>, vector<32x128xbf16>, vector<8x128xf32> -> vector<8x128xf32>
    %c0_34 = arith.constant 0 : index
    %c0_35 = arith.constant 0 : index
    %115 = vector.load %arg10[%c0_34, %c0_35] : memref<1x128xf32, #tpu.memory_space<vmem>>, vector<1x128xf32>
    %116 = vector.broadcast %115 : vector<1x128xf32> to vector<8x128xf32>
    %117 = arith.addf %114, %116 : vector<8x128xf32>
    %118 = arith.mulf %117, %117 : vector<8x128xf32>
    %119 = arith.mulf %117, %118 : vector<8x128xf32>
    %cst_36 = arith.constant 4.471500e-02 : f32
    %120 = vector.broadcast %cst_36 : f32 to vector<8x128xf32>
    %121 = arith.mulf %120, %119 : vector<8x128xf32>
    %122 = arith.addf %117, %121 : vector<8x128xf32>
    %cst_37 = arith.constant 0.797884583 : f32
    %123 = vector.broadcast %cst_37 : f32 to vector<8x128xf32>
    %124 = arith.mulf %123, %122 : vector<8x128xf32>
    %125 = math.tanh %124 : vector<8x128xf32>
    %cst_38 = arith.constant 1.000000e+00 : f32
    %126 = vector.broadcast %cst_38 : f32 to vector<8x128xf32>
    %127 = arith.addf %126, %125 : vector<8x128xf32>
    %cst_39 = arith.constant 5.000000e-01 : f32
    %128 = vector.broadcast %cst_39 : f32 to vector<8x128xf32>
    %129 = arith.mulf %128, %127 : vector<8x128xf32>
    %130 = arith.mulf %117, %129 : vector<8x128xf32>
    %131 = arith.truncf %130 : vector<8x128xf32> to vector<8x128xbf16>
    %c0_40 = arith.constant 0 : index
    %c0_41 = arith.constant 0 : index
    %132 = vector.load %arg11[%c0_40, %c0_41] : memref<128x32xbf16, #tpu.memory_space<vmem>>, vector<128x32xbf16>
    %cst_42 = arith.constant dense<0.000000e+00> : vector<8x32xf32>
    %133 = tpu.matmul %131, %132, %cst_42 {dimension_numbers = #tpu.dot_dimension_numbers<[1], [0], [0], [1], [0, 0, 1, 1], [], []>} : vector<8x128xbf16>, vector<128x32xbf16>, vector<8x32xf32> -> vector<8x32xf32>
    %c0_43 = arith.constant 0 : index
    %c0_44 = arith.constant 0 : index
    %134 = vector.load %arg12[%c0_43, %c0_44] : memref<1x32xf32, #tpu.memory_space<vmem>>, vector<1x32xf32>
    %135 = vector.broadcast %134 : vector<1x32xf32> to vector<8x32xf32>
    %136 = arith.addf %133, %135 : vector<8x32xf32>
    %137 = arith.addf %87, %136 : vector<8x32xf32>
    %138 = vector.shape_cast %137 : vector<8x32xf32> to vector<1x8x32xf32>
    %c0_45 = arith.constant 0 : index
    %c0_46 = arith.constant 0 : index
    %c0_47 = arith.constant 0 : index
    %139 = vector.load %arg13[%c0_45, %c0_46, %c0_47] : memref<1x8x32xf32, #tpu.memory_space<vmem>>, vector<1x8x32xf32>
    tpu.vector_store %arg13[%c0_45, %c0_46, %c0_47], %138 {strides = array<i32>} : memref<1x8x32xf32, #tpu.memory_space<vmem>>, vector<1x8x32xf32>,
    return
  }
  func.func @transform_0(%arg0: i32) -> (i32, i32, i32) {
    %c0_i32 = arith.constant 0 : i32
    %c0_i32_0 = arith.constant 0 : i32
    %c0_i32_1 = arith.constant 0 : i32
    return %arg0, %c0_i32, %c0_i32_0 : i32, i32, i32
  }
  func.func @transform_1(%arg0: i32) -> (i32, i32) {
    %c0_i32 = arith.constant 0 : i32
    %c0_i32_0 = arith.constant 0 : i32
    %c0_i32_1 = arith.constant 0 : i32
    return %c0_i32, %c0_i32_0 : i32, i32
  }
  func.func @transform_2(%arg0: i32) -> (i32, i32) {
    %c0_i32 = arith.constant 0 : i32
    %c0_i32_0 = arith.constant 0 : i32
    %c0_i32_1 = arith.constant 0 : i32
    return %c0_i32, %c0_i32_0 : i32, i32
  }
  func.func @transform_3(%arg0: i32) -> (i32, i32) {
    %c0_i32 = arith.constant 0 : i32
    %c0_i32_0 = arith.constant 0 : i32
    %c0_i32_1 = arith.constant 0 : i32
    return %c0_i32, %c0_i32_0 : i32, i32
  }
  func.func @transform_4(%arg0: i32) -> (i32, i32) {
    %c0_i32 = arith.constant 0 : i32
    %c0_i32_0 = arith.constant 0 : i32
    %c0_i32_1 = arith.constant 0 : i32
    return %c0_i32, %c0_i32_0 : i32, i32
  }
  func.func @transform_5(%arg0: i32) -> (i32, i32) {
    %c0_i32 = arith.constant 0 : i32
    %c0_i32_0 = arith.constant 0 : i32
    %c0_i32_1 = arith.constant 0 : i32
    return %c0_i32, %c0_i32_0 : i32, i32
  }
  func.func @transform_6(%arg0: i32) -> (i32, i32) {
    %c0_i32 = arith.constant 0 : i32
    %c0_i32_0 = arith.constant 0 : i32
    %c0_i32_1 = arith.constant 0 : i32
    return %c0_i32, %c0_i32_0 : i32, i32
  }
  func.func @transform_7(%arg0: i32) -> (i32, i32) {
    %c0_i32 = arith.constant 0 : i32
    %c0_i32_0 = arith.constant 0 : i32
    %c0_i32_1 = arith.constant 0 : i32
    return %c0_i32, %c0_i32_0 : i32, i32
  }
  func.func @transform_8(%arg0: i32) -> (i32, i32) {
    %c0_i32 = arith.constant 0 : i32
    %c0_i32_0 = arith.constant 0 : i32
    %c0_i32_1 = arith.constant 0 : i32
    return %c0_i32, %c0_i32_0 : i32, i32
  }
  func.func @transform_9(%arg0: i32) -> (i32, i32) {
    %c0_i32 = arith.constant 0 : i32
    %c0_i32_0 = arith.constant 0 : i32
    %c0_i32_1 = arith.constant 0 : i32
    return %c0_i32, %c0_i32_0 : i32, i32
  }
  func.func @transform_10(%arg0: i32) -> (i32, i32) {
    %c0_i32 = arith.constant 0 : i32
    %c0_i32_0 = arith.constant 0 : i32
    %c0_i32_1 = arith.constant 0 : i32
    return %c0_i32, %c0_i32_0 : i32, i32
  }
  func.func @transform_11(%arg0: i32) -> (i32, i32) {
    %c0_i32 = arith.constant 0 : i32
    %c0_i32_0 = arith.constant 0 : i32
    %c0_i32_1 = arith.constant 0 : i32
    return %c0_i32, %c0_i32_0 : i32, i32
  }
  func.func @transform_12(%arg0: i32) -> (i32, i32, i32) {
    %c0_i32 = arith.constant 0 : i32
    %c0_i32_0 = arith.constant 0 : i32
    %c0_i32_1 = arith.constant 0 : i32
    return %arg0, %c0_i32, %c0_i32_0 : i32, i32, i32
  }
}

</mosaic_0001>

<llo_original>
// kernel: tpu_custom_call.1
$region0: #{tpu_custom_call.1}
  #allocation0 [shape = 'u32[]', space=smem, size = 0x4, offset = 0x4, fixed_abs, tag = 'smem constant byte address 0x4 - core index']
  #allocation1 [shape = 'u32[72,128]{1,0:T(1,128)}', space=vmem, size = 0x9000, scoped, tag = 'internal scratch']
  %s0 = inlined_call_operand.vmem [shape: f32[2,8,32], index: 0, kind: input, shape index: {}]
  %s1 = inlined_call_operand.vmem [shape: f32[1,32], index: 1, kind: input, shape index: {}]
  %s2 = inlined_call_operand.vmem [shape: f32[1,32], index: 2, kind: input, shape index: {}]
  %s3 = inlined_call_operand.vmem [shape: bf16[32,96], index: 3, kind: input, shape index: {}]
  %s4 = inlined_call_operand.vmem [shape: bf16[32,32], index: 4, kind: input, shape index: {}]
  %s5 = inlined_call_operand.vmem [shape: f32[1,32], index: 5, kind: input, shape index: {}]
  %s6 = inlined_call_operand.vmem [shape: f32[1,32], index: 6, kind: input, shape index: {}]
  %s7 = inlined_call_operand.vmem [shape: f32[1,32], index: 7, kind: input, shape index: {}]
  %s8 = inlined_call_operand.vmem [shape: bf16[32,128], index: 8, kind: input, shape index: {}]
  %s9 = inlined_call_operand.vmem [shape: f32[1,128], index: 9, kind: input, shape index: {}]
  %s10 = inlined_call_operand.vmem [shape: bf16[128,32], index: 10, kind: input, shape index: {}]
  %s11 = inlined_call_operand.vmem [shape: f32[1,32], index: 11, kind: input, shape index: {}]
  %s12 = inlined_call_operand.hbm [shape: f32[2,8,32], index: 12, kind: output, shape index: {}]
  %s13 = sld [smem:[#allocation0]]
  $region81: #{tpu_custom_call.1} parent=0
    _
  %s15 = ssub.s32 1, %s13
  %s16 = scalar_select 0, %s15, %s13
  $region1: #{tpu_custom_call.1} parent=0
    #allocation2 [shape = 'u8[8192]{0}', space=vmem, size = 0x2000, scoped, tag = 'output window, operand 0']
    #allocation3 [shape = 's32[2]{0}', space=sflag, size = 0x8, scoped, tag = 'scoped memory for tpu_custom_call.1']
    %17 = vsyncpa [#allocation3], 0
    %s18 = scalar_lea.sflag [#allocation3], 1
    %19 = vsyncpa %s18, 0
    loop: start=0, step=1, limit=4
    $region2: #{tpu_custom_call.1} parent=1 // loop_pre_header
      _
    $region3: #{tpu_custom_call.1} parent=1 // loop_header
      %s21 = sphi 0, %s25
      %p22 = scmp.ge.s32.totalorder %s21, 4
      %s31 = sphi 0, %s33
      %s34 = sphi 0, %s31
      %s35 = sphi 0, %s34
      %s51 = sphi 0, %s35
      %s55 = sphi 0, %s55
      %s57 = sphi 0, %s55
      %s58 = sphi 0, %s57
      %s72 = sphi 0, %s58
      %s76 = sphi 0, %s76
      %s78 = sphi 0, %s76
      %s79 = sphi 0, %s78
      %s93 = sphi 0, %s79
      %s97 = sphi 0, %s97
      %s99 = sphi 0, %s97
      %s100 = sphi 0, %s99
      %s114 = sphi 0, %s100
      %s118 = sphi 0, %s118
      %s120 = sphi 0, %s118
      %s121 = sphi 0, %s120
      %s135 = sphi 0, %s121
      %s139 = sphi 0, %s139
      %s141 = sphi 0, %s139
      %s142 = sphi 0, %s141
      %s156 = sphi 0, %s142
      %s160 = sphi 0, %s160
      %s162 = sphi 0, %s160
      %s163 = sphi 0, %s162
      %s177 = sphi 0, %s163
      %s181 = sphi 0, %s181
      %s183 = sphi 0, %s181
      %s184 = sphi 0, %s183
      %s198 = sphi 0, %s184
      %s202 = sphi 0, %s202
      %s204 = sphi 0, %s202
      %s205 = sphi 0, %s204
      %s219 = sphi 0, %s205
      %s223 = sphi 0, %s223
      %s225 = sphi 0, %s223
      %s226 = sphi 0, %s225
      %s240 = sphi 0, %s226
      %s244 = sphi 0, %s244
      %s246 = sphi 0, %s244
      %s247 = sphi 0, %s246
      %s261 = sphi 0, %s247
      %s265 = sphi 0, %s265
      %s267 = sphi 0, %s265
      %s268 = sphi 0, %s267
      %s282 = sphi 0, %s268
      %s288 = sphi 0, %s290
      %s291 = sphi 0, %s288
      %s292 = sphi 0, %s291
      %s308 = sphi 0, %s292
    $region4: #{tpu_custom_call.1} parent=1 // loop_header_branch
      %24 = sbr.rel (%p22) target = $region8
    $region5: #{tpu_custom_call.1} parent=1 // loop_body
      %s26 = ssub.s32 %s21, 1
      %s27 = ssub.s32 %s21, 2
      %s28 = sadd.s32 %s21, 1
      %s29 = ssub.s32 %s21, %s28
      %p30 = scmp.eq.s32.totalorder %s29, 0
      %s32 = sadd.s32 %s31, 1
      %s33 = scalar_select %p30, %s31, %s32
      %p36 = pneg %p30
      %p37 = scmp.eq.s32.totalorder %s21, 1
      %p38 = por %p36, %p37
      %p39 = scmp.ne.s32.totalorder %s31, %s34
      %p40 = scmp.eq.s32.totalorder %s21, 0
      %p41 = por %p39, %p40
      %p42 = scmp.ne.s32.totalorder %s31, %s34
      %p43 = scmp.eq.s32.totalorder %s26, 1
      %p44 = por %p42, %p43
      %p45 = scmp.ne.s32.totalorder %s34, %s35
      %p46 = scmp.eq.s32.totalorder %s26, 0
      %p47 = por %p45, %p46
      %p48 = scmp.ne.s32.totalorder %s34, %s35
      %p49 = scmp.eq.s32.totalorder %s27, 1
      %p50 = por %p48, %p49
      %p52 = scmp.ne.s32.totalorder %s35, %s51
      %p53 = scmp.eq.s32.totalorder %s27, 0
      %p54 = por %p52, %p53
      %s56 = sadd.s32 %s55, 1
      %p59 = scmp.eq.s32.totalorder %s21, 1
      %p60 = scmp.ne.s32.totalorder %s55, %s57
      %p61 = scmp.eq.s32.totalorder %s21, 0
      %p62 = por %p60, %p61
      %p63 = scmp.ne.s32.totalorder %s55, %s57
      %p64 = scmp.eq.s32.totalorder %s26, 1
      %p65 = por %p63, %p64
      %p66 = scmp.ne.s32.totalorder %s57, %s58
      %p67 = scmp.eq.s32.totalorder %s26, 0
      %p68 = por %p66, %p67
      %p69 = scmp.ne.s32.totalorder %s57, %s58
      %p70 = scmp.eq.s32.totalorder %s27, 1
      %p71 = por %p69, %p70
      %p73 = scmp.ne.s32.totalorder %s58, %s72
      %p74 = scmp.eq.s32.totalorder %s27, 0
      %p75 = por %p73, %p74
      %s77 = sadd.s32 %s76, 1
      %p80 = scmp.eq.s32.totalorder %s21, 1
      %p81 = scmp.ne.s32.totalorder %s76, %s78
      %p82 = scmp.eq.s32.totalorder %s21, 0
      %p83 = por %p81, %p82
      %p84 = scmp.ne.s32.totalorder %s76, %s78
      %p85 = scmp.eq.s32.totalorder %s26, 1
      %p86 = por %p84, %p85
      %p87 = scmp.ne.s32.totalorder %s78, %s79
      %p88 = scmp.eq.s32.totalorder %s26, 0
      %p89 = por %p87, %p88
      %p90 = scmp.ne.s32.totalorder %s78, %s79
      %p91 = scmp.eq.s32.totalorder %s27, 1
      %p92 = por %p90, %p91
      %p94 = scmp.ne.s32.totalorder %s79, %s93
      %p95 = scmp.eq.s32.totalorder %s27, 0
      %p96 = por %p94, %p95
      %s98 = sadd.s32 %s97, 1
      %p101 = scmp.eq.s32.totalorder %s21, 1
      %p102 = scmp.ne.s32.totalorder %s97, %s99
      %p103 = scmp.eq.s32.totalorder %s21, 0
      %p104 = por %p102, %p103
      %p105 = scmp.ne.s32.totalorder %s97, %s99
      %p106 = scmp.eq.s32.totalorder %s26, 1
      %p107 = por %p105, %p106
      %p108 = scmp.ne.s32.totalorder %s99, %s100
      %p109 = scmp.eq.s32.totalorder %s26, 0
      %p110 = por %p108, %p109
      %p111 = scmp.ne.s32.totalorder %s99, %s100
      %p112 = scmp.eq.s32.totalorder %s27, 1
      %p113 = por %p111, %p112
      %p115 = scmp.ne.s32.totalorder %s100, %s114
      %p116 = scmp.eq.s32.totalorder %s27, 0
      %p117 = por %p115, %p116
      %s119 = sadd.s32 %s118, 1
      %p122 = scmp.eq.s32.totalorder %s21, 1
      %p123 = scmp.ne.s32.totalorder %s118, %s120
      %p124 = scmp.eq.s32.totalorder %s21, 0
      %p125 = por %p123, %p124
      %p126 = scmp.ne.s32.totalorder %s118, %s120
      %p127 = scmp.eq.s32.totalorder %s26, 1
      %p128 = por %p126, %p127
      %p129 = scmp.ne.s32.totalorder %s120, %s121
      %p130 = scmp.eq.s32.totalorder %s26, 0
      %p131 = por %p129, %p130
      %p132 = scmp.ne.s32.totalorder %s120, %s121
      %p133 = scmp.eq.s32.totalorder %s27, 1
      %p134 = por %p132, %p133
      %p136 = scmp.ne.s32.totalorder %s121, %s135
      %p137 = scmp.eq.s32.totalorder %s27, 0
      %p138 = por %p136, %p137
      %s140 = sadd.s32 %s139, 1
      %p143 = scmp.eq.s32.totalorder %s21, 1
      %p144 = scmp.ne.s32.totalorder %s139, %s141
      %p145 = scmp.eq.s32.totalorder %s21, 0
      %p146 = por %p144, %p145
      %p147 = scmp.ne.s32.totalorder %s139, %s141
      %p148 = scmp.eq.s32.totalorder %s26, 1
      %p149 = por %p147, %p148
      %p150 = scmp.ne.s32.totalorder %s141, %s142
      %p151 = scmp.eq.s32.totalorder %s26, 0
      %p152 = por %p150, %p151
      %p153 = scmp.ne.s32.totalorder %s141, %s142
      %p154 = scmp.eq.s32.totalorder %s27, 1
      %p155 = por %p153, %p154
      %p157 = scmp.ne.s32.totalorder %s142, %s156
      %p158 = scmp.eq.s32.totalorder %s27, 0
      %p159 = por %p157, %p158
      %s161 = sadd.s32 %s160, 1
      %p164 = scmp.eq.s32.totalorder %s21, 1
      %p165 = scmp.ne.s32.totalorder %s160, %s162
      %p166 = scmp.eq.s32.totalorder %s21, 0
      %p167 = por %p165, %p166
      %p168 = scmp.ne.s32.totalorder %s160, %s162
      %p169 = scmp.eq.s32.totalorder %s26, 1
      %p170 = por %p168, %p169
      %p171 = scmp.ne.s32.totalorder %s162, %s163
      %p172 = scmp.eq.s32.totalorder %s26, 0
      %p173 = por %p171, %p172
      %p174 = scmp.ne.s32.totalorder %s162, %s163
      %p175 = scmp.eq.s32.totalorder %s27, 1
      %p176 = por %p174, %p175
      %p178 = scmp.ne.s32.totalorder %s163, %s177
      %p179 = scmp.eq.s32.totalorder %s27, 0
      %p180 = por %p178, %p179
      %s182 = sadd.s32 %s181, 1
      %p185 = scmp.eq.s32.totalorder %s21, 1
      %p186 = scmp.ne.s32.totalorder %s181, %s183
      %p187 = scmp.eq.s32.totalorder %s21, 0
      %p188 = por %p186, %p187
      %p189 = scmp.ne.s32.totalorder %s181, %s183
      %p190 = scmp.eq.s32.totalorder %s26, 1
      %p191 = por %p189, %p190
      %p192 = scmp.ne.s32.totalorder %s183, %s184
      %p193 = scmp.eq.s32.totalorder %s26, 0
      %p194 = por %p192, %p193
      %p195 = scmp.ne.s32.totalorder %s183, %s184
      %p196 = scmp.eq.s32.totalorder %s27, 1
      %p197 = por %p195, %p196
      %p199 = scmp.ne.s32.totalorder %s184, %s198
      %p200 = scmp.eq.s32.totalorder %s27, 0
      %p201 = por %p199, %p200
      %s203 = sadd.s32 %s202, 1
      %p206 = scmp.eq.s32.totalorder %s21, 1
      %p207 = scmp.ne.s32.totalorder %s202, %s204
      %p208 = scmp.eq.s32.totalorder %s21, 0
      %p209 = por %p207, %p208
      %p210 = scmp.ne.s32.totalorder %s202, %s204
      %p211 = scmp.eq.s32.totalorder %s26, 1
      %p212 = por %p210, %p211
      %p213 = scmp.ne.s32.totalorder %s204, %s205
      %p214 = scmp.eq.s32.totalorder %s26, 0
      %p215 = por %p213, %p214
      %p216 = scmp.ne.s32.totalorder %s204, %s205
      %p217 = scmp.eq.s32.totalorder %s27, 1
      %p218 = por %p216, %p217
      %p220 = scmp.ne.s32.totalorder %s205, %s219
      %p221 = scmp.eq.s32.totalorder %s27, 0
      %p222 = por %p220, %p221
      %s224 = sadd.s32 %s223, 1
      %p227 = scmp.eq.s32.totalorder %s21, 1
      %p228 = scmp.ne.s32.totalorder %s223, %s225
      %p229 = scmp.eq.s32.totalorder %s21, 0
      %p230 = por %p228, %p229
      %p231 = scmp.ne.s32.totalorder %s223, %s225
      %p232 = scmp.eq.s32.totalorder %s26, 1
      %p233 = por %p231, %p232
      %p234 = scmp.ne.s32.totalorder %s225, %s226
      %p235 = scmp.eq.s32.totalorder %s26, 0
      %p236 = por %p234, %p235
      %p237 = scmp.ne.s32.totalorder %s225, %s226
      %p238 = scmp.eq.s32.totalorder %s27, 1
      %p239 = por %p237, %p238
      %p241 = scmp.ne.s32.totalorder %s226, %s240
      %p242 = scmp.eq.s32.totalorder %s27, 0
      %p243 = por %p241, %p242
      %s245 = sadd.s32 %s244, 1
      %p248 = scmp.eq.s32.totalorder %s21, 1
      %p249 = scmp.ne.s32.totalorder %s244, %s246
      %p250 = scmp.eq.s32.totalorder %s21, 0
      %p251 = por %p249, %p250
      %p252 = scmp.ne.s32.totalorder %s244, %s246
      %p253 = scmp.eq.s32.totalorder %s26, 1
      %p254 = por %p252, %p253
      %p255 = scmp.ne.s32.totalorder %s246, %s247
      %p256 = scmp.eq.s32.totalorder %s26, 0
      %p257 = por %p255, %p256
      %p258 = scmp.ne.s32.totalorder %s246, %s247
      %p259 = scmp.eq.s32.totalorder %s27, 1
      %p260 = por %p258, %p259
      %p262 = scmp.ne.s32.totalorder %s247, %s261
      %p263 = scmp.eq.s32.totalorder %s27, 0
      %p264 = por %p262, %p263
      %s266 = sadd.s32 %s265, 1
      %p269 = scmp.eq.s32.totalorder %s21, 1
      %p270 = scmp.ne.s32.totalorder %s265, %s267
      %p271 = scmp.eq.s32.totalorder %s21, 0
      %p272 = por %p270, %p271
      %p273 = scmp.ne.s32.totalorder %s265, %s267
      %p274 = scmp.eq.s32.totalorder %s26, 1
      %p275 = por %p273, %p274
      %p276 = scmp.ne.s32.totalorder %s267, %s268
      %p277 = scmp.eq.s32.totalorder %s26, 0
      %p278 = por %p276, %p277
      %p279 = scmp.ne.s32.totalorder %s267, %s268
      %p280 = scmp.eq.s32.totalorder %s27, 1
      %p281 = por %p279, %p280
      %p283 = scmp.ne.s32.totalorder %s268, %s282
      %p284 = scmp.eq.s32.totalorder %s27, 0
      %p285 = por %p283, %p284
      %s286 = ssub.s32 %s21, %s28
      %p287 = scmp.eq.s32.totalorder %s286, 0
      %s289 = sadd.s32 %s288, 1
      %s290 = scalar_select %p287, %s288, %s289
      %p293 = pneg %p287
      %p294 = scmp.eq.s32.totalorder %s21, 1
      %p295 = por %p293, %p294
      %p296 = scmp.ne.s32.totalorder %s288, %s291
      %p297 = scmp.eq.s32.totalorder %s21, 0
      %p298 = por %p296, %p297
      %p299 = scmp.ne.s32.totalorder %s288, %s291
      %p300 = scmp.eq.s32.totalorder %s26, 1
      %p301 = por %p299, %p300
      %p302 = scmp.ne.s32.totalorder %s291, %s292
      %p303 = scmp.eq.s32.totalorder %s26, 0
      %p304 = por %p302, %p303
      %p305 = scmp.ne.s32.totalorder %s291, %s292
      %p306 = scmp.eq.s32.totalorder %s27, 1
      %p307 = por %p305, %p306
      %p309 = scmp.ne.s32.totalorder %s292, %s308
      %p310 = scmp.eq.s32.totalorder %s27, 0
      %p311 = por %p309, %p310
      %p312 = scmp.le.s32.totalorder 1, %s21
      %p313 = scmp.lt.s32.totalorder %s21, 3
      %p314 = pnand %p312, %p313
      %p315 = pneg %p314
      // Predicated region
      $region9: #{tpu_custom_call.1} parent=5 // pred_check
        _
      $region10: #{tpu_custom_call.1} parent=5 // pred_check_branch
        %317 = sbr.rel (%p314) target = $region12
      $region11: #{tpu_custom_call.1} parent=5 // pred_region
        %s318 = ssub.s32 %s21, 1
        // Predicated region
        $region13: #{tpu_custom_call.1} parent=11 // pred_check
          %p319 = pneg %p68
        $region14: #{tpu_custom_call.1} parent=11 // pred_check_branch
          %321 = sbr.rel (%p319) target = $region16
        $region15: #{tpu_custom_call.1} parent=11 // pred_region
          _
        $region16: #{tpu_custom_call.1} parent=11 // pred_fallthru
          _
        // Predicated region
        $region17: #{tpu_custom_call.1} parent=11 // pred_check
          %p322 = pneg %p89
        $region18: #{tpu_custom_call.1} parent=11 // pred_check_branch
          %324 = sbr.rel (%p322) target = $region20
        $region19: #{tpu_custom_call.1} parent=11 // pred_region
          _
        $region20: #{tpu_custom_call.1} parent=11 // pred_fallthru
          _
        // Predicated region
        $region21: #{tpu_custom_call.1} parent=11 // pred_check
          %p325 = pneg %p110
        $region22: #{tpu_custom_call.1} parent=11 // pred_check_branch
          %327 = sbr.rel (%p325) target = $region24
        $region23: #{tpu_custom_call.1} parent=11 // pred_region
          _
        $region24: #{tpu_custom_call.1} parent=11 // pred_fallthru
          _
        // Predicated region
        $region25: #{tpu_custom_call.1} parent=11 // pred_check
          %p328 = pneg %p131
        $region26: #{tpu_custom_call.1} parent=11 // pred_check_branch
          %330 = sbr.rel (%p328) target = $region28
        $region27: #{tpu_custom_call.1} parent=11 // pred_region
          _
        $region28: #{tpu_custom_call.1} parent=11 // pred_fallthru
          _
        // Predicated region
        $region29: #{tpu_custom_call.1} parent=11 // pred_check
          %p331 = pneg %p152
        $region30: #{tpu_custom_call.1} parent=11 // pred_check_branch
          %333 = sbr.rel (%p331) target = $region32
        $region31: #{tpu_custom_call.1} parent=11 // pred_region
          _
        $region32: #{tpu_custom_call.1} parent=11 // pred_fallthru
          _
        // Predicated region
        $region33: #{tpu_custom_call.1} parent=11 // pred_check
          %p334 = pneg %p173
        $region34: #{tpu_custom_call.1} parent=11 // pred_check_branch
          %336 = sbr.rel (%p334) target = $region36
        $region35: #{tpu_custom_call.1} parent=11 // pred_region
          _
        $region36: #{tpu_custom_call.1} parent=11 // pred_fallthru
          _
        // Predicated region
        $region37: #{tpu_custom_call.1} parent=11 // pred_check
          %p337 = pneg %p194
        $region38: #{tpu_custom_call.1} parent=11 // pred_check_branch
          %339 = sbr.rel (%p337) target = $region40
        $region39: #{tpu_custom_call.1} parent=11 // pred_region
          _
        $region40: #{tpu_custom_call.1} parent=11 // pred_fallthru
          _
        // Predicated region
        $region41: #{tpu_custom_call.1} parent=11 // pred_check
          %p340 = pneg %p215
        $region42: #{tpu_custom_call.1} parent=11 // pred_check_branch
          %342 = sbr.rel (%p340) target = $region44
        $region43: #{tpu_custom_call.1} parent=11 // pred_region
          _
        $region44: #{tpu_custom_call.1} parent=11 // pred_fallthru
          _
        // Predicated region
        $region45: #{tpu_custom_call.1} parent=11 // pred_check
          %p343 = pneg %p236
        $region46: #{tpu_custom_call.1} parent=11 // pred_check_branch
          %345 = sbr.rel (%p343) target = $region48
        $region47: #{tpu_custom_call.1} parent=11 // pred_region
          _
        $region48: #{tpu_custom_call.1} parent=11 // pred_fallthru
          _
        // Predicated region
        $region49: #{tpu_custom_call.1} parent=11 // pred_check
          %p346 = pneg %p257
        $region50: #{tpu_custom_call.1} parent=11 // pred_check_branch
          %348 = sbr.rel (%p346) target = $region52
        $region51: #{tpu_custom_call.1} parent=11 // pred_region
          _
        $region52: #{tpu_custom_call.1} parent=11 // pred_fallthru
          _
        // Predicated region
        $region53: #{tpu_custom_call.1} parent=11 // pred_check
          %p349 = pneg %p278
        $region54: #{tpu_custom_call.1} parent=11 // pred_check_branch
          %351 = sbr.rel (%p349) target = $region56
        $region55: #{tpu_custom_call.1} parent=11 // pred_region
          _
        $region56: #{tpu_custom_call.1} parent=11 // pred_fallthru
          _
      $region12: #{tpu_custom_call.1} parent=5 // pred_fallthru
        _
      %p352 = scmp.lt.s32.totalorder %s21, 2
      // Predicated region
      $region57: #{tpu_custom_call.1} parent=5 // pred_check
        %p353 = pneg %p352
      $region58: #{tpu_custom_call.1} parent=5 // pred_check_branch
        %355 = sbr.rel (%p353) target = $region60
      $region59: #{tpu_custom_call.1} parent=5 // pred_region
        // Predicated region
        $region61: #{tpu_custom_call.1} parent=59 // pred_check
          %p356 = pneg %p41
        $region62: #{tpu_custom_call.1} parent=59 // pred_check_branch
          %358 = sbr.rel (%p356) target = $region64
        $region63: #{tpu_custom_call.1} parent=59 // pred_region
          %p359 = scmp.lt.s32.totalorder %s21, 1
          %s360 = scalar_select %p359, %s21, 1
          %s361 = smul.addr %s360, 8
          %s362 = scalar_lea.vmem %s0, %s361
        $region64: #{tpu_custom_call.1} parent=59 // pred_fallthru
          _
      $region60: #{tpu_custom_call.1} parent=5 // pred_fallthru
        _
      %p363 = scmp.le.s32.totalorder 1, %s21
      %p364 = scmp.lt.s32.totalorder %s21, 3
      %p365 = pnand %p363, %p364
      %p366 = pneg %p365
      // Predicated region
      $region65: #{tpu_custom_call.1} parent=5 // pred_check
        _
      $region66: #{tpu_custom_call.1} parent=5 // pred_check_branch
        %368 = sbr.rel (%p365) target = $region68
      $region67: #{tpu_custom_call.1} parent=5 // pred_region
        %s369 = ssub.s32 %s21, 1
        %p370 = scmp.lt.s32.totalorder %s26, 1
        %s371 = scalar_select %p370, %s26, 1
        %s372 = smul.addr %s371, 8
        %s373 = scalar_lea.vmem %s0, %s372
        %p374 = pneg %p47
        %p375 = pneg %p44
        %p376 = pneg %p68
        %p377 = pneg %p65
        %p378 = pneg %p89
        %p379 = pneg %p86
        %p380 = pneg %p110
        %p381 = pneg %p107
        %p382 = pneg %p131
        %p383 = pneg %p128
        %p384 = pneg %p152
        %p385 = pneg %p149
        %p386 = pneg %p173
        %p387 = pneg %p170
        %p388 = pneg %p194
        %p389 = pneg %p191
        %p390 = pneg %p215
        %p391 = pneg %p212
        %p392 = pneg %p236
        %p393 = pneg %p233
        %p394 = pneg %p257
        %p395 = pneg %p254
        %p396 = pneg %p278
        %p397 = pneg %p275
        %p398 = pneg %p304
        %p399 = pneg %p301
        %s400 = sand.u32 %s291, 1
        %s401 = scalar_lea.sflag [#allocation3], %s400
        %s402 = sand.u32 %s291, 1
        %s403 = smul.addr %s402, 8
        %s404 = scalar_lea.vmem [#allocation2], %s403
        %p405 = scmp.lt.s32.totalorder %s26, 1
        %s406 = scalar_select %p405, %s26, 1
        %s407 = smul.addr %s406, 8
        %s408 = scalar_lea.vmem %s0, %s407
        %v410 = vld [vmem:[%s408] sm:$0xff]
        %v411 = vld [vmem:[%s1] sm:$0x1]
        %v412 = vld [vmem:[%s2] sm:$0x1]
        %vm413 = vcmask 261120
        %v414 = vsel %vm413, %v410, 0.0
        %415 = vadd.xlane.f32.xlu0 %v414
        %v416 = vpop.xlane.xlu0 %415
        %v417 = vrcp.pop 32.0
        %v418 = vmul.f32 32.0, %v417
        %v419 = vsub.f32 1.0, %v418
        %v420 = vmul.f32 %v417, %v419
        %v421 = vadd.f32 %v417, %v420
        %vm422 = vweird.f32 %v417
        %v423 = vsel %vm422, %v417, %v421
        %v424 = vmul.f32 %v416, %v423
        %v425 = vsub.f32 %v410, %v424
        %v426 = vmul.f32 %v425, %v425
        %v427 = vsel %vm413, %v426, 0.0
        %428 = vadd.xlane.f32.xlu0 %v427
        %v429 = vpop.xlane.xlu0 %428
        %v430 = vmul.f32 %v429, %v423
        %v431 = vadd.f32 %v430, 1e-05
        %v432 = vrsqrt.pop %v431
        %v433 = vmul.f32 %v432, %v431
        %v434 = vmul.f32 %v433, %v432
        %v435 = vmul.f32 0.5, %v434
        %v436 = vsub.f32 1.5, %v435
        %v437 = vmul.f32 %v432, %v436
        %vm438 = vweird.f32 %v431
        %vm439 = vweird.f32 %v432
        %vm440 = vmor %vm438, %vm439
        %v441 = vsel %vm440, %v432, %v437
        %v442 = vmul.f32 %v425, %v441
        %v444 = vperm.slane %v411, 0
        %v446 = vmul.f32 %v442, %v444
        %v448 = vperm.slane %v412, 0
        %v450 = vadd.f32 %v446, %v448
        %v451 = vpack.c.bf16 %v450, %v450
        %v452 = vld [vmem:[%s3] sm:$0xf]
        %v453 = vld [vmem:[%s3 + $0x4] sm:$0xf]
        %v454 = vld [vmem:[%s3 + $0x8] sm:$0xf]
        %v455 = vld [vmem:[%s3 + $0xc] sm:$0xf]
        %v460 = vunpack.c.l.b16 %v452
        %v461 = vunpack.c.l.b16 %v453
        %v462 = vunpack.c.l.b16 %v454
        %v463 = vunpack.c.l.b16 %v455
        %v464 = vpack.c.b16 %v461, %v460
        %v465 = vpack.c.b16 %v463, %v462
        %v469 = vsel %vm413, %v451, 0
        %471 = vmatpush.bf16.msra.mxu0 0
        %472 = vmatpush.bf16.msra.mxu0 0
        %473 = vmatpush.bf16.msra.mxu0 0
        %474 = vmatpush.bf16.msra.mxu0 0
        %475 = vmatpush.bf16.msra.mxu0 0
        %476 = vmatpush.bf16.msra.mxu0 0
        %477 = vmatpush.bf16.msra.mxu0 %v465
        %478 = vmatpush.bf16.msra.mxu0 %v464
        %479 = vmatmul.bf16.gmra.mxu0 %v469
        %v480 = vpop.f32.mrf.mxu0
        %v481 = vadd.f32 0.0, %v480
        %v482 = vpop.f32.mrf.mxu0
        %483 = vdwg.mxu0
        %v484 = vpack.c.bf16 %v481, %v481
        %486 = vrot.lane.b32.xlu0 %v484, 120
        %v487 = vpop.permute.xlu0 %486
        %488 = vrot.lane.b32.xlu0 %v484, 112
        %v489 = vpop.permute.xlu0 %488
        %490 = vrot.lane.b32.xlu0 %v484, 104
        %v491 = vpop.permute.xlu0 %490
        %v492 = vunpack.c.l.b16 %v484
        %v493 = vpack.c.b16 %v492, %v492
        %494 = vrot.lane.b32.xlu0 %v493, 96
        %v495 = vpop.permute.xlu0 %494
        %vm496 = vcmask 64512
        %v498 = vsel %vm496, %v484, 0
        %v501 = vsel %vm496, %v495, 0
        %503 = vmatpush.bf16.xpose.msra.mxu0 0
        %504 = vmatpush.bf16.xpose.msra.mxu0 0
        %505 = vmatpush.bf16.xpose.msra.mxu0 0
        %506 = vmatpush.bf16.xpose.msra.mxu0 0
        %507 = vmatpush.bf16.xpose.msra.mxu0 0
        %508 = vmatpush.bf16.xpose.msra.mxu0 0
        %509 = vmatpush.bf16.xpose.msra.mxu0 0
        %510 = vmatpush.bf16.xpose.msra.mxu0 %v501
        %511 = vmatmul.bf16.gmra.mxu0 %v498
        %v512 = vpop.f32.mrf.mxu0
        %v513 = vadd.f32 0.0, %v512
        %v514 = vpop.f32.mrf.mxu0
        %515 = vdwg.mxu0
        %v516 = vunpack.c.l.b16 %v487
        %v517 = vpack.c.b16 %v516, %v516
        %518 = vrot.lane.b32.xlu0 %v517, 96
        %v519 = vpop.permute.xlu0 %518
        %v521 = vsel %vm496, %v487, 0
        %v524 = vsel %vm496, %v519, 0
        %526 = vmatpush.bf16.xpose.msra.mxu0 0
        %527 = vmatpush.bf16.xpose.msra.mxu0 0
        %528 = vmatpush.bf16.xpose.msra.mxu0 0
        %529 = vmatpush.bf16.xpose.msra.mxu0 0
        %530 = vmatpush.bf16.xpose.msra.mxu0 0
        %531 = vmatpush.bf16.xpose.msra.mxu0 0
        %532 = vmatpush.bf16.xpose.msra.mxu0 0
        %533 = vmatpush.bf16.xpose.msra.mxu0 %v524
        %534 = vmatmul.bf16.gmra.mxu0 %v521
        %v535 = vpop.f32.mrf.mxu0
        %v536 = vadd.f32 0.0, %v535
        %v537 = vpop.f32.mrf.mxu0
        %538 = vdwg.mxu0
        %v539 = vunpack.c.l.b16 %v489
        %v540 = vpack.c.b16 %v539, %v539
        %541 = vrot.lane.b32.xlu0 %v540, 96
        %v542 = vpop.permute.xlu0 %541
        %v544 = vsel %vm496, %v489, 0
        %v547 = vsel %vm496, %v542, 0
        %549 = vmatpush.bf16.xpose.msra.mxu0 0
        %550 = vmatpush.bf16.xpose.msra.mxu0 0
        %551 = vmatpush.bf16.xpose.msra.mxu0 0
        %552 = vmatpush.bf16.xpose.msra.mxu0 0
        %553 = vmatpush.bf16.xpose.msra.mxu0 0
        %554 = vmatpush.bf16.xpose.msra.mxu0 0
        %555 = vmatpush.bf16.xpose.msra.mxu0 0
        %556 = vmatpush.bf16.xpose.msra.mxu0 %v547
        %557 = vmatmul.bf16.gmra.mxu0 %v544
        %v558 = vpop.f32.mrf.mxu0
        %v559 = vadd.f32 0.0, %v558
        %v560 = vpop.f32.mrf.mxu0
        %561 = vdwg.mxu0
        %v562 = vunpack.c.l.b16 %v491
        %v563 = vpack.c.b16 %v562, %v562
        %564 = vrot.lane.b32.xlu0 %v563, 96
        %v565 = vpop.permute.xlu0 %564
        %v567 = vsel %vm496, %v491, 0
        %v570 = vsel %vm496, %v565, 0
        %572 = vmatpush.bf16.xpose.msra.mxu0 0
        %573 = vmatpush.bf16.xpose.msra.mxu0 0
        %574 = vmatpush.bf16.xpose.msra.mxu0 0
        %575 = vmatpush.bf16.xpose.msra.mxu0 0
        %576 = vmatpush.bf16.xpose.msra.mxu0 0
        %577 = vmatpush.bf16.xpose.msra.mxu0 0
        %578 = vmatpush.bf16.xpose.msra.mxu0 0
        %579 = vmatpush.bf16.xpose.msra.mxu0 %v570
        %580 = vmatmul.bf16.gmra.mxu0 %v567
        %v581 = vpop.f32.mrf.mxu0
        %v582 = vadd.f32 0.0, %v581
        %v583 = vpop.f32.mrf.mxu0
        %584 = vdwg.mxu0
        %v585 = vsel %vm496, %v513, -inf
        %586 = vmax.xlane.f32.xlu0 %v585
        %v587 = vpop.xlane.xlu0 %586
        %v588 = vsel %vm496, %v536, -inf
        %589 = vmax.xlane.f32.xlu0 %v588
        %v590 = vpop.xlane.xlu0 %589
        %v591 = vsel %vm496, %v559, -inf
        %592 = vmax.xlane.f32.xlu0 %v591
        %v593 = vpop.xlane.xlu0 %592
        %v594 = vsel %vm496, %v582, -inf
        %595 = vmax.xlane.f32.xlu0 %v594
        %v596 = vpop.xlane.xlu0 %595
        %v597 = vsub.f32 %v513, %v587
        %v598 = vsub.f32 %v536, %v590
        %v599 = vsub.f32 %v559, %v593
        %v600 = vsub.f32 %v582, %v596
        %v601 = vmul.f32 %v597, 1.442695
        %v602 = vpow.pop %v601
        %v603 = vmul.f32 %v598, 1.442695
        %v604 = vpow.pop %v603
        %v605 = vmul.f32 %v599, 1.442695
        %v606 = vpow.pop %v605
        %v607 = vmul.f32 %v600, 1.442695
        %v608 = vpow.pop %v607
        %v609 = vsel %vm496, %v602, 0.0
        %610 = vadd.xlane.f32.xlu0 %v609
        %v611 = vpop.xlane.xlu0 %610
        %v612 = vsel %vm496, %v604, 0.0
        %613 = vadd.xlane.f32.xlu0 %v612
        %v614 = vpop.xlane.xlu0 %613
        %v615 = vsel %vm496, %v606, 0.0
        %616 = vadd.xlane.f32.xlu0 %v615
        %v617 = vpop.xlane.xlu0 %616
        %v618 = vsel %vm496, %v608, 0.0
        %619 = vadd.xlane.f32.xlu0 %v618
        %v620 = vpop.xlane.xlu0 %619
        %v621 = vrcp.pop %v611
        %v622 = vrcp.pop %v614
        %v623 = vrcp.pop %v617
        %v624 = vrcp.pop %v620
        %v625 = vmul.f32 %v602, %v621
        %v626 = vmul.f32 %v604, %v622
        %v627 = vmul.f32 %v606, %v623
        %v628 = vmul.f32 %v608, %v624
        %v629 = vpack.c.bf16 %v625, %v625
        %v630 = vpack.c.bf16 %v626, %v626
        %v631 = vpack.c.bf16 %v627, %v627
        %v632 = vpack.c.bf16 %v628, %v628
        %633 = vrot.lane.b32.xlu0 %v493, 64
        %v634 = vpop.permute.xlu0 %633
        %v636 = vsel %vm496, %v629, 0
        %vm638 = vcmask 1043456
        %v640 = vsel %vm638, %v634, 0
        %642 = vmatpush.bf16.msra.mxu0 0
        %643 = vmatpush.bf16.msra.mxu0 0
        %644 = vmatpush.bf16.msra.mxu0 0
        %645 = vmatpush.bf16.msra.mxu0 0
        %646 = vmatpush.bf16.msra.mxu0 0
        %647 = vmatpush.bf16.msra.mxu0 0
        %648 = vmatpush.bf16.msra.mxu0 0
        %649 = vmatpush.bf16.msra.mxu0 %v640
        %650 = vmatmul.bf16.gmra.mxu0 %v636
        %v651 = vpop.f32.mrf.mxu0
        %v652 = vadd.f32 0.0, %v651
        %v653 = vpop.f32.mrf.mxu0
        %654 = vdwg.mxu0
        %655 = vrot.lane.b32.xlu0 %v517, 64
        %v656 = vpop.permute.xlu0 %655
        %v658 = vsel %vm496, %v630, 0
        %v661 = vsel %vm638, %v656, 0
        %663 = vmatpush.bf16.msra.mxu0 0
        %664 = vmatpush.bf16.msra.mxu0 0
        %665 = vmatpush.bf16.msra.mxu0 0
        %666 = vmatpush.bf16.msra.mxu0 0
        %667 = vmatpush.bf16.msra.mxu0 0
        %668 = vmatpush.bf16.msra.mxu0 0
        %669 = vmatpush.bf16.msra.mxu0 0
        %670 = vmatpush.bf16.msra.mxu0 %v661
        %671 = vmatmul.bf16.gmra.mxu0 %v658
        %v672 = vpop.f32.mrf.mxu0
        %v673 = vadd.f32 0.0, %v672
        %v674 = vpop.f32.mrf.mxu0
        %675 = vdwg.mxu0
        %676 = vrot.lane.b32.xlu0 %v540, 64
        %v677 = vpop.permute.xlu0 %676
        %v679 = vsel %vm496, %v631, 0
        %v682 = vsel %vm638, %v677, 0
        %684 = vmatpush.bf16.msra.mxu0 0
        %685 = vmatpush.bf16.msra.mxu0 0
        %686 = vmatpush.bf16.msra.mxu0 0
        %687 = vmatpush.bf16.msra.mxu0 0
        %688 = vmatpush.bf16.msra.mxu0 0
        %689 = vmatpush.bf16.msra.mxu0 0
        %690 = vmatpush.bf16.msra.mxu0 0
        %691 = vmatpush.bf16.msra.mxu0 %v682
        %692 = vmatmul.bf16.gmra.mxu0 %v679
        %v693 = vpop.f32.mrf.mxu0
        %v694 = vadd.f32 0.0, %v693
        %v695 = vpop.f32.mrf.mxu0
        %696 = vdwg.mxu0
        %697 = vrot.lane.b32.xlu0 %v563, 64
        %v698 = vpop.permute.xlu0 %697
        %v700 = vsel %vm496, %v632, 0
        %v703 = vsel %vm638, %v698, 0
        %705 = vmatpush.bf16.msra.mxu0 0
        %706 = vmatpush.bf16.msra.mxu0 0
        %707 = vmatpush.bf16.msra.mxu0 0
        %708 = vmatpush.bf16.msra.mxu0 0
        %709 = vmatpush.bf16.msra.mxu0 0
        %710 = vmatpush.bf16.msra.mxu0 0
        %711 = vmatpush.bf16.msra.mxu0 0
        %712 = vmatpush.bf16.msra.mxu0 %v703
        %713 = vmatmul.bf16.gmra.mxu0 %v700
        %v714 = vpop.f32.mrf.mxu0
        %v715 = vadd.f32 0.0, %v714
        %v716 = vpop.f32.mrf.mxu0
        %717 = vdwg.mxu0
        %719 = vrot.lane.b32.xlu0 %v673, 8
        %v720 = vpop.permute.xlu0 %719
        %723 = vrot.lane.b32.xlu0 %v694, 16
        %v724 = vpop.permute.xlu0 %723
        %727 = vrot.lane.b32.xlu0 %v715, 24
        %v728 = vpop.permute.xlu0 %727
        %v730 = vsel %vm496, %v652, %v720
        %vm731 = vcmask 130048
        %v732 = vsel %vm731, %v730, %v724
        %vm733 = vcmask 195584
        %v734 = vsel %vm733, %v732, %v728
        %v735 = vpack.c.bf16 %v734, %v734
        %v736 = vld [vmem:[%s4] sm:$0xf]
        %v737 = vld [vmem:[%s4 + $0x4] sm:$0xf]
        %v738 = vld [vmem:[%s4 + $0x8] sm:$0xf]
        %v739 = vld [vmem:[%s4 + $0xc] sm:$0xf]
        %v740 = vld [vmem:[%s5] sm:$0x1]
        %v742 = vperm.slane %v740, 0
        %v748 = vunpack.c.l.b16 %v736
        %v749 = vunpack.c.l.b16 %v737
        %v750 = vunpack.c.l.b16 %v738
        %v751 = vunpack.c.l.b16 %v739
        %v752 = vpack.c.b16 %v749, %v748
        %v753 = vpack.c.b16 %v751, %v750
        %v757 = vsel %vm413, %v735, 0
        %759 = vmatpush.bf16.msra.mxu0 0
        %760 = vmatpush.bf16.msra.mxu0 0
        %761 = vmatpush.bf16.msra.mxu0 0
        %762 = vmatpush.bf16.msra.mxu0 0
        %763 = vmatpush.bf16.msra.mxu0 0
        %764 = vmatpush.bf16.msra.mxu0 0
        %765 = vmatpush.bf16.msra.mxu0 %v753
        %766 = vmatpush.bf16.msra.mxu0 %v752
        %767 = vmatmul.bf16.gmra.mxu0 %v757
        %v768 = vpop.f32.mrf.mxu0
        %v769 = vadd.f32 %v742, %v768
        %v770 = vpop.f32.mrf.mxu0
        %771 = vdwg.mxu0
        %v772 = vadd.f32 %v410, %v769
        %v773 = vld [vmem:[%s6] sm:$0x1]
        %v774 = vld [vmem:[%s7] sm:$0x1]
        %v775 = vsel %vm413, %v772, 0.0
        %776 = vadd.xlane.f32.xlu0 %v775
        %v777 = vpop.xlane.xlu0 %776
        %v778 = vmul.f32 %v777, %v423
        %v779 = vsub.f32 %v772, %v778
        %v780 = vmul.f32 %v779, %v779
        %v781 = vsel %vm413, %v780, 0.0
        %782 = vadd.xlane.f32.xlu0 %v781
        %v783 = vpop.xlane.xlu0 %782
        %v784 = vmul.f32 %v783, %v423
        %v785 = vadd.f32 %v784, 1e-05
        %v786 = vrsqrt.pop %v785
        %v787 = vmul.f32 %v786, %v785
        %v788 = vmul.f32 %v787, %v786
        %v789 = vmul.f32 0.5, %v788
        %v790 = vsub.f32 1.5, %v789
        %v791 = vmul.f32 %v786, %v790
        %vm792 = vweird.f32 %v785
        %vm793 = vweird.f32 %v786
        %vm794 = vmor %vm792, %vm793
        %v795 = vsel %vm794, %v786, %v791
        %v796 = vmul.f32 %v779, %v795
        %v798 = vperm.slane %v773, 0
        %v800 = vmul.f32 %v796, %v798
        %v802 = vperm.slane %v774, 0
        %v804 = vadd.f32 %v800, %v802
        %v805 = vpack.c.bf16 %v804, %v804
        %v806 = vld [vmem:[%s8] sm:$0xf]
        %v807 = vld [vmem:[%s8 + $0x4] sm:$0xf]
        %v808 = vld [vmem:[%s8 + $0x8] sm:$0xf]
        %v809 = vld [vmem:[%s8 + $0xc] sm:$0xf]
        %v810 = vld [vmem:[%s9] sm:$0x1]
        %v812 = vperm.slane %v810, 0
        %v818 = vunpack.c.l.b16 %v806
        %v819 = vunpack.c.l.b16 %v807
        %v820 = vunpack.c.l.b16 %v808
        %v821 = vunpack.c.l.b16 %v809
        %v822 = vpack.c.b16 %v819, %v818
        %v823 = vpack.c.b16 %v821, %v820
        %v827 = vsel %vm413, %v805, 0
        %829 = vmatpush.bf16.msra.mxu0 0
        %830 = vmatpush.bf16.msra.mxu0 0
        %831 = vmatpush.bf16.msra.mxu0 0
        %832 = vmatpush.bf16.msra.mxu0 0
        %833 = vmatpush.bf16.msra.mxu0 0
        %834 = vmatpush.bf16.msra.mxu0 0
        %835 = vmatpush.bf16.msra.mxu0 %v823
        %836 = vmatpush.bf16.msra.mxu0 %v822
        %837 = vmatmul.bf16.gmra.mxu0 %v827
        %v838 = vpop.f32.mrf.mxu0
        %v839 = vadd.f32 %v812, %v838
        %v840 = vpop.f32.mrf.mxu0
        %841 = vdwg.mxu0
        %v842 = vmul.f32 %v839, %v839
        %v843 = vmul.f32 %v839, %v842
        %v844 = vmul.f32 %v843, 0.044715
        %v845 = vadd.f32 %v839, %v844
        %v846 = vmul.f32 %v845, 0.7978846
        %v847 = vtanh.pop %v846
        %v848 = vadd.f32 %v847, 1.0
        %v849 = vmul.f32 %v848, 0.5
        %v850 = vmul.f32 %v839, %v849
        %v851 = vpack.c.bf16 %v850, %v850
        %v852 = vld [vmem:[%s10] sm:$0xf]
        %v853 = vld [vmem:[%s10 + $0x4] sm:$0xf]
        %v854 = vld [vmem:[%s10 + $0x8] sm:$0xf]
        %v855 = vld [vmem:[%s10 + $0xc] sm:$0xf]
        %v856 = vld [vmem:[%s10 + $0x10] sm:$0xf]
        %v857 = vld [vmem:[%s10 + $0x14] sm:$0xf]
        %v858 = vld [vmem:[%s10 + $0x18] sm:$0xf]
        %v859 = vld [vmem:[%s10 + $0x1c] sm:$0xf]
        %v860 = vld [vmem:[%s10 + $0x20] sm:$0xf]
        %v861 = vld [vmem:[%s10 + $0x24] sm:$0xf]
        %v862 = vld [vmem:[%s10 + $0x28] sm:$0xf]
        %v863 = vld [vmem:[%s10 + $0x2c] sm:$0xf]
        %v864 = vld [vmem:[%s10 + $0x30] sm:$0xf]
        %v865 = vld [vmem:[%s10 + $0x34] sm:$0xf]
        %v866 = vld [vmem:[%s10 + $0x38] sm:$0xf]
        %v867 = vld [vmem:[%s10 + $0x3c] sm:$0xf]
        %v868 = vld [vmem:[%s11] sm:$0x1]
        %v870 = vperm.slane %v868, 0
        %v888 = vunpack.c.l.b16 %v852
        %v889 = vunpack.c.l.b16 %v853
        %v890 = vunpack.c.l.b16 %v854
        %v891 = vunpack.c.l.b16 %v855
        %v892 = vunpack.c.l.b16 %v856
        %v893 = vunpack.c.l.b16 %v857
        %v894 = vunpack.c.l.b16 %v858
        %v895 = vunpack.c.l.b16 %v859
        %v896 = vunpack.c.l.b16 %v860
        %v897 = vunpack.c.l.b16 %v861
        %v898 = vunpack.c.l.b16 %v862
        %v899 = vunpack.c.l.b16 %v863
        %v900 = vunpack.c.l.b16 %v864
        %v901 = vunpack.c.l.b16 %v865
        %v902 = vunpack.c.l.b16 %v866
        %v903 = vunpack.c.l.b16 %v867
        %v904 = vpack.c.b16 %v889, %v888
        %v905 = vpack.c.b16 %v891, %v890
        %v906 = vpack.c.b16 %v893, %v892
        %v907 = vpack.c.b16 %v895, %v894
        %v908 = vpack.c.b16 %v897, %v896
        %v909 = vpack.c.b16 %v899, %v898
        %v910 = vpack.c.b16 %v901, %v900
        %v911 = vpack.c.b16 %v903, %v902
        %920 = vmatpush.bf16.msra.mxu0 %v911
        %921 = vmatpush.bf16.msra.mxu0 %v910
        %922 = vmatpush.bf16.msra.mxu0 %v909
        %923 = vmatpush.bf16.msra.mxu0 %v908
        %924 = vmatpush.bf16.msra.mxu0 %v907
        %925 = vmatpush.bf16.msra.mxu0 %v906
        %926 = vmatpush.bf16.msra.mxu0 %v905
        %927 = vmatpush.bf16.msra.mxu0 %v904
        %928 = vmatmul.bf16.gmra.mxu0 %v851
        %v929 = vpop.f32.mrf.mxu0
        %v930 = vadd.f32 %v870, %v929
        %v931 = vpop.f32.mrf.mxu0
        %932 = vdwg.mxu0
        %v933 = vadd.f32 %v772, %v930
        %934 = vst.msk [vmem:[%s404] sm:$0xff] %vm413, %v933
        %s935 = sand.u32 %s291, 1
        %s936 = scalar_lea.sflag [#allocation3], %s935
        %s937 = sand.u32 %s291, 1
        %s938 = smul.addr %s937, 8
        %s939 = scalar_lea.vmem [#allocation2], %s938
        // Predicated region
        $region69: #{tpu_custom_call.1} parent=67 // pred_check
          %p940 = pneg %p301
        $region70: #{tpu_custom_call.1} parent=67 // pred_check_branch
          %942 = sbr.rel (%p940) target = $region72
        $region71: #{tpu_custom_call.1} parent=67 // pred_region
          %944 = vsyncadd %s936, 0
          %s945 = smul.addr %s26, 8
          %s946 = scalar_lea.hbm %s12, %s945
          %s948 = sshll.u32 %s939, 4
          %s949 = int_to_ptr.vmem [resolvable:$true] %s948
          %s950 = sshll.u32 %s946, 4
          %s951 = int_to_ptr.hbm [resolvable:$true] %s950
          %953 = dma.vmem_to_hbm [thread:$0]  %s949, 128, %s951, %s936
        $region72: #{tpu_custom_call.1} parent=67 // pred_fallthru
          _
      $region68: #{tpu_custom_call.1} parent=5 // pred_fallthru
        _
      %p954 = scmp.le.s32.totalorder 2, %s21
      // Predicated region
      $region73: #{tpu_custom_call.1} parent=5 // pred_check
        %p955 = pneg %p954
      $region74: #{tpu_custom_call.1} parent=5 // pred_check_branch
        %957 = sbr.rel (%p955) target = $region76
      $region75: #{tpu_custom_call.1} parent=5 // pred_region
        %s958 = ssub.s32 %s21, 2
        // Predicated region
        $region77: #{tpu_custom_call.1} parent=75 // pred_check
          %p959 = pneg %p307
        $region78: #{tpu_custom_call.1} parent=75 // pred_check_branch
          %961 = sbr.rel (%p959) target = $region80
        $region79: #{tpu_custom_call.1} parent=75 // pred_region
          %s962 = sand.u32 %s292, 1
          %s963 = scalar_lea.sflag [#allocation3], %s962
          %s964 = sand.u32 %s292, 1
          %s965 = smul.addr %s964, 8
          %s966 = scalar_lea.vmem [#allocation2], %s965
          %968 = dma.done %s963, 128
        $region80: #{tpu_custom_call.1} parent=75 // pred_fallthru
          _
      $region76: #{tpu_custom_call.1} parent=5 // pred_fallthru
        _
    $region6: #{tpu_custom_call.1} parent=1 // loop_footer
      %s25 = sadd.s32 1, %s21
    $region7: #{tpu_custom_call.1} parent=1 // loop_footer_branch
      %20 = sbr.rel target = $region3
    $region8: #{tpu_custom_call.1} parent=1 // loop_exit
      _
    %969 = vsyncpa [#allocation3], 1
    %s970 = scalar_lea.sflag [#allocation3], 1
    %971 = vsyncpa %s970, 1

</llo_original>
